<compile_context>
chip_gen: v6e
topology: v6e:2x2x1
jax: 0.10.0
libtpu: 0.0.40
codegen_flags: <defaults>
</compile_context>

<pallas_src>
import functools

import jax
import jax.numpy as jnp
from jax.experimental import pallas as pl
from jax.experimental.pallas import tpu as pltpu


def _round_up(n, m):
    return ((n + m - 1) // m) * m


def ps_forward_kernel(pu_ref, pi_ref, g_ref, wb_ref, o_ref, *, low, up):
    # pu_ref, pi_ref : (1, TN) f32 VMEM  pre-folded, pre-gathered W[u]·wu / H[i]·wv
    # g_ref          : (1, TN) f32 VMEM  interference values
    # wb_ref         : (1, 2)  f32 VMEM  [w_g, bias]
    # o_ref          : (1, TN) f32 VMEM  clipped propensities
    w_g = wb_ref[:, 0:1]    # (1, 1) -> broadcasts over the lane axis
    bias = wb_ref[:, 1:2]   # (1, 1)
    logit = pu_ref[...] + pi_ref[...] + g_ref[...] * w_g + bias
    o_ref[...] = jnp.clip(jax.nn.sigmoid(logit), low, up)


def ps_forward(x, g, W, H, lin_w, lin_b, low=0.05, up=0.95, tile_n=2048):
    """JAX/Pallas equivalent of PS.forward.

    x     : (N, 2) int32  user / item indices
    g     : (N,)   float32
    W     : (num_users, K) float32   user embedding table
    H     : (num_items, K) float32   item embedding table
    lin_w : (1, 2K+1) float32        nn.Linear weight (out_features=1)
    lin_b : (1,)      float32        nn.Linear bias
    returns (N,) float32
    """
    num_users, K = W.shape
    num_items, _ = H.shape
    N = x.shape[0]

    wu = lin_w[0, :K].astype(jnp.float32)           # (K,)
    wv = lin_w[0, K:2 * K].astype(jnp.float32)      # (K,)
    w_g = lin_w[0, 2 * K].astype(jnp.float32)       # ()
    bias = lin_b.reshape(()).astype(jnp.float32)    # ()

    # Grid-invariant fold, done once (exact f32 elementwise-sum; avoids any
    # bf16 matmul decomposition ambiguity for the tiny GEMV).
    pu = jnp.sum(W.astype(jnp.float32) * wu[None, :], axis=1)   # (num_users,)
    pi = jnp.sum(H.astype(jnp.float32) * wv[None, :], axis=1)   # (num_items,)

    # Tiny XLA gather of the pre-folded scalars (8 B/sample extra HBM traffic;
    # removes all O(vocab x TN) in-kernel one-hot work).
    pu_s = jnp.take(pu, x[:, 0].astype(jnp.int32), axis=0)      # (N,)
    pi_s = jnp.take(pi, x[:, 1].astype(jnp.int32), axis=0)      # (N,)

    # Lane-dense tiling: batch on lanes, tile a multiple of 128.
    TN = min(int(tile_n), _round_up(max(N, 1), 128))
    TN = _round_up(TN, 128)
    Npad = _round_up(max(N, 1), TN)
    pad = Npad - N

    pu_p = jnp.pad(pu_s, (0, pad)).reshape(1, Npad)
    pi_p = jnp.pad(pi_s, (0, pad)).reshape(1, Npad)
    g_p = jnp.pad(g.astype(jnp.float32), (0, pad)).reshape(1, Npad)
    wb = jnp.stack([w_g, bias]).reshape(1, 2)

    grid = (Npad // TN,)
    cost = pl.CostEstimate(
        flops=Npad * 6,
        transcendentals=Npad,
        bytes_accessed=Npad * 16 + wb.size * 4,
    )

    out = pl.pallas_call(
        functools.partial(ps_forward_kernel, low=float(low), up=float(up)),
        out_shape=jax.ShapeDtypeStruct((1, Npad), jnp.float32),
        grid_spec=pltpu.PrefetchScalarGridSpec(
            num_scalar_prefetch=0,
            grid=grid,
            in_specs=[
                pl.BlockSpec((1, TN), lambda i: (0, i)),   # pu_s
                pl.BlockSpec((1, TN), lambda i: (0, i)),   # pi_s
                pl.BlockSpec((1, TN), lambda i: (0, i)),   # g
                pl.BlockSpec((1, 2), lambda i: (0, 0)),    # [w_g, bias]
            ],
            out_specs=pl.BlockSpec((1, TN), lambda i: (0, i)),
        ),
        compiler_params=pltpu.CompilerParams(
            dimension_semantics=("parallel",),
            vmem_limit_bytes=32 * 1024 * 1024,
        ),
        cost_estimate=cost,
    )(pu_p, pi_p, g_p, wb)

    return out[0, :N]


def ps_forward_ref(x, g, W, H, lin_w, lin_b, low=0.05, up=0.95):
    """Pure-JAX reference (mirrors the PyTorch forward)."""
    U = jnp.take(W, x[:, 0], axis=0)
    V = jnp.take(H, x[:, 1], axis=0)
    z = jnp.concatenate([U, V, g[:, None]], axis=1)
    logit = jnp.sum(z * lin_w[0], axis=1) + lin_b[0]
    return jnp.clip(jax.nn.sigmoid(logit), low, up)


if __name__ == "__main__":
    key = jax.random.PRNGKey(0)
    num_users, num_items, K = 290, 300, 4   # module defaults (embedding_k=4)

    k1, k2, k3, k4, k5, k6, k7, k8, k9, k10 = jax.random.split(key, 10)
    W = jax.random.normal(k1, (num_users, K), dtype=jnp.float32)
    H = jax.random.normal(k2, (num_items, K), dtype=jnp.float32)
    lin_w = 0.1 * jax.random.normal(k3, (1, 2 * K + 1), dtype=jnp.float32)
    lin_b = 0.1 * jax.random.normal(k4, (1,), dtype=jnp.float32)

    # --- small batch: exercises tail padding, single grid step ---
    N1 = 37
    u1 = jax.random.randint(k5, (N1,), 0, num_users, dtype=jnp.int32)
    i1 = jax.random.randint(k6, (N1,), 0, num_items, dtype=jnp.int32)
    x1 = jnp.stack([u1, i1], axis=1)
    g1 = jax.random.normal(k7, (N1,), dtype=jnp.float32)

    out1 = ps_forward(x1, g1, W, H, lin_w, lin_b)
    jax.block_until_ready(out1)
    ref1 = ps_forward_ref(x1, g1, W, H, lin_w, lin_b)
    assert out1.shape == (N1,) and out1.dtype == jnp.float32
    assert jnp.allclose(out1, ref1, atol=1e-5, rtol=1e-5), (
        float(jnp.max(jnp.abs(out1 - ref1))))

    # --- larger batch with a small tile: exercises a multi-step grid ---
    N2 = 300
    u2 = jax.random.randint(k8, (N2,), 0, num_users, dtype=jnp.int32)
    i2 = jax.random.randint(k9, (N2,), 0, num_items, dtype=jnp.int32)
    x2 = jnp.stack([u2, i2], axis=1)
    g2 = jax.random.normal(k10, (N2,), dtype=jnp.float32)

    out2 = ps_forward(x2, g2, W, H, lin_w, lin_b, tile_n=128)
    jax.block_until_ready(out2)
    ref2 = ps_forward_ref(x2, g2, W, H, lin_w, lin_b)
    assert out2.shape == (N2,) and out2.dtype == jnp.float32
    assert jnp.allclose(out2, ref2, atol=1e-5, rtol=1e-5), (
        float(jnp.max(jnp.abs(out2 - ref2))))

    print("KERNEL_OK")
</pallas_src>

<mosaic_0001>
module attributes {stable_mosaic.version = 11 : i64} {
  func.func @ps_forward_kernel(%arg0: i32, %arg1: memref<1x128xf32, #tpu.memory_space<vmem>>, %arg2: memref<1x128xf32, #tpu.memory_space<vmem>>, %arg3: memref<1x128xf32, #tpu.memory_space<vmem>>, %arg4: memref<1x2xf32, #tpu.memory_space<vmem>>, %arg5: memref<1x128xf32, #tpu.memory_space<vmem>>) attributes {dimension_semantics = [#tpu.dimension_semantics<parallel>], iteration_bounds = array<i64: 1>, scalar_prefetch = 0 : i64, scratch_operands = 0 : i64, tpu.core_type = #tpu.core_type<tc>, window_params = [{transform_indices = @transform_0, window_bounds = array<i64: 1, 128>}, {transform_indices = @transform_1, window_bounds = array<i64: 1, 128>}, {transform_indices = @transform_2, window_bounds = array<i64: 1, 128>}, {pipeline_mode = #tpu.pipeline_mode<synchronous>, transform_indices = @transform_3, window_bounds = array<i64: 1, 2>}, {transform_indices = @transform_4, window_bounds = array<i64: 1, 128>}]} {
    %c0 = arith.constant 0 : index
    %c0_0 = arith.constant 0 : index
    %0 = vector.load %arg4[%c0, %c0_0] : memref<1x2xf32, #tpu.memory_space<vmem>>, vector<1x1xf32>
    %c0_1 = arith.constant 0 : index
    %c1 = arith.constant 1 : index
    %1 = vector.load %arg4[%c0_1, %c1] : memref<1x2xf32, #tpu.memory_space<vmem>>, vector<1x1xf32>
    %c0_2 = arith.constant 0 : index
    %c0_3 = arith.constant 0 : index
    %2 = vector.load %arg1[%c0_2, %c0_3] : memref<1x128xf32, #tpu.memory_space<vmem>>, vector<1x128xf32>
    %c0_4 = arith.constant 0 : index
    %c0_5 = arith.constant 0 : index
    %3 = vector.load %arg2[%c0_4, %c0_5] : memref<1x128xf32, #tpu.memory_space<vmem>>, vector<1x128xf32>
    %4 = arith.addf %2, %3 : vector<1x128xf32>
    %c0_6 = arith.constant 0 : index
    %c0_7 = arith.constant 0 : index
    %5 = vector.load %arg3[%c0_6, %c0_7] : memref<1x128xf32, #tpu.memory_space<vmem>>, vector<1x128xf32>
    %6 = vector.broadcast %0 : vector<1x1xf32> to vector<1x128xf32>
    %7 = arith.mulf %5, %6 : vector<1x128xf32>
    %8 = arith.addf %4, %7 : vector<1x128xf32>
    %9 = vector.broadcast %1 : vector<1x1xf32> to vector<1x128xf32>
    %10 = arith.addf %8, %9 : vector<1x128xf32>
    %11 = arith.negf %10 : vector<1x128xf32>
    %12 = math.exp %11 : vector<1x128xf32>
    %cst = arith.constant 1.000000e+00 : f32
    %13 = vector.broadcast %cst : f32 to vector<1x128xf32>
    %14 = arith.addf %13, %12 : vector<1x128xf32>
    %15 = arith.divf %13, %14 : vector<1x128xf32>
    %cst_8 = arith.constant 5.000000e-02 : f32
    %cst_9 = arith.constant 0.949999988 : f32
    %16 = vector.broadcast %cst_8 : f32 to vector<1x128xf32>
    %17 = arith.maximumf %16, %15 : vector<1x128xf32>
    %18 = vector.broadcast %cst_9 : f32 to vector<1x128xf32>
    %19 = arith.minimumf %18, %17 : vector<1x128xf32>
    %c0_10 = arith.constant 0 : index
    %c0_11 = arith.constant 0 : index
    %20 = vector.load %arg5[%c0_10, %c0_11] : memref<1x128xf32, #tpu.memory_space<vmem>>, vector<1x128xf32>
    tpu.vector_store %arg5[%c0_10, %c0_11], %19 {strides = array<i32>} : memref<1x128xf32, #tpu.memory_space<vmem>>, vector<1x128xf32>,
    return
  }
  func.func @transform_0(%arg0: i32) -> (i32, i32) {
    %c0_i32 = arith.constant 0 : i32
    %c0_i32_0 = arith.constant 0 : i32
    return %c0_i32, %arg0 : i32, i32
  }
  func.func @transform_1(%arg0: i32) -> (i32, i32) {
    %c0_i32 = arith.constant 0 : i32
    %c0_i32_0 = arith.constant 0 : i32
    return %c0_i32, %arg0 : i32, i32
  }
  func.func @transform_2(%arg0: i32) -> (i32, i32) {
    %c0_i32 = arith.constant 0 : i32
    %c0_i32_0 = arith.constant 0 : i32
    return %c0_i32, %arg0 : i32, i32
  }
  func.func @transform_3(%arg0: i32) -> (i32, i32) {
    %c0_i32 = arith.constant 0 : i32
    %c0_i32_0 = arith.constant 0 : i32
    %c0_i32_1 = arith.constant 0 : i32
    return %c0_i32, %c0_i32_0 : i32, i32
  }
  func.func @transform_4(%arg0: i32) -> (i32, i32) {
    %c0_i32 = arith.constant 0 : i32
    %c0_i32_0 = arith.constant 0 : i32
    return %c0_i32, %arg0 : i32, i32
  }
}

</mosaic_0001>

<llo_original>
// kernel: tpu_custom_call.1
$region0: #{tpu_custom_call.1}
  #allocation0 [shape = 'u32[]', space=smem, size = 0x4, offset = 0x4, fixed_abs, tag = 'smem constant byte address 0x4 - core index']
  #allocation1 [shape = 'u32[144,128]{1,0:T(1,128)}', space=vmem, size = 0x12000, scoped, tag = 'internal scratch']
  %s0 = inlined_call_operand.hbm [shape: f32[1,128], index: 0, kind: input, shape index: {}]
  %s1 = inlined_call_operand.vmem [shape: f32[1,128], index: 1, kind: input, shape index: {}]
  %s2 = inlined_call_operand.vmem [shape: f32[1,128], index: 2, kind: input, shape index: {}]
  %s3 = inlined_call_operand.vmem [shape: f32[1,2], index: 3, kind: input, shape index: {}]
  %s4 = inlined_call_operand.hbm [shape: f32[1,128], index: 4, kind: output, shape index: {}]
  %s5 = sld [smem:[#allocation0]]
  $region30: #{tpu_custom_call.1} parent=0
    _
  %s7 = ssub.s32 1, %s5
  %s8 = scalar_select 0, %s7, %s5
  $region1: #{tpu_custom_call.1} parent=0
    #allocation2 [shape = 'u8[512]{0}', space=vmem, size = 0x400, scoped, tag = 'input window, operand 0, single buffered']
    #allocation3 [shape = 's32[1]{0}', space=sflag, size = 0x4, scoped, tag = 'scoped memory for tpu_custom_call.1']
    #allocation4 [shape = 's32[1]{0}', space=sflag, size = 0x4, scoped, tag = 'scoped memory for tpu_custom_call.1']
    #allocation5 [shape = 'u8[512]{0}', space=vmem, size = 0x400, scoped, tag = 'output window, operand 0, single buffered']
    %9 = vsyncpa [#allocation3], 0
    %10 = vsyncpa [#allocation4], 0
    // Predicated region
    $region2: #{tpu_custom_call.1} parent=1 // pred_check
      _
    $region3: #{tpu_custom_call.1} parent=1 // pred_check_branch
      %12 = sbr.rel (0) target = $region5
    $region4: #{tpu_custom_call.1} parent=1 // pred_region
      %s14 = ssub.s32 16, 16
      %15 = vsyncadd [#allocation3], %s14
      %s17 = sshll.u32 [#allocation2], 4
      %s18 = int_to_ptr.vmem [resolvable:$true] %s17
      %20 = dma.hbm_to_vmem [thread:$0]  %s0, 16, %s18, [#allocation3]
    $region5: #{tpu_custom_call.1} parent=1 // pred_fallthru
      _
    // Predicated region
    $region6: #{tpu_custom_call.1} parent=1 // pred_check
      _
    $region7: #{tpu_custom_call.1} parent=1 // pred_check_branch
      %22 = sbr.rel (0) target = $region9
    $region8: #{tpu_custom_call.1} parent=1 // pred_region
      _
    $region9: #{tpu_custom_call.1} parent=1 // pred_fallthru
      _
    // Predicated region
    $region10: #{tpu_custom_call.1} parent=1 // pred_check
      _
    $region11: #{tpu_custom_call.1} parent=1 // pred_check_branch
      %24 = sbr.rel (0) target = $region13
    $region12: #{tpu_custom_call.1} parent=1 // pred_region
      _
    $region13: #{tpu_custom_call.1} parent=1 // pred_fallthru
      _
    // Predicated region
    $region14: #{tpu_custom_call.1} parent=1 // pred_check
      _
    $region15: #{tpu_custom_call.1} parent=1 // pred_check_branch
      %26 = sbr.rel (0) target = $region17
    $region16: #{tpu_custom_call.1} parent=1 // pred_region
      _
    $region17: #{tpu_custom_call.1} parent=1 // pred_fallthru
      _
    // Predicated region
    $region18: #{tpu_custom_call.1} parent=1 // pred_check
      _
    $region19: #{tpu_custom_call.1} parent=1 // pred_check_branch
      %28 = sbr.rel (0) target = $region21
    $region20: #{tpu_custom_call.1} parent=1 // pred_region
      %29 = dma.done [#allocation3], 16
    $region21: #{tpu_custom_call.1} parent=1 // pred_fallthru
      _
    %v30 = vld [vmem:[%s3] sm:$0x1]
    %v31 = vld [vmem:[#allocation2] sm:$0x1]
    %v32 = vld [vmem:[%s1] sm:$0x1]
    %v33 = vadd.f32 %v31, %v32
    %v34 = vld [vmem:[%s2] sm:$0x1]
    %36 = vset.pattern.permute.xlu0 0
    %37 = vperm.xlu0 %36, %v30
    %v38 = vpop.permute.xlu0 %37
    %v40 = vlaneseq
    %v41 = vshrl.u32 %v40, 7
    %v42 = vsub.s32 0, %v41
    %v43 = vrot.slane %v38, %v42
    %v44 = vmul.f32 %v34, %v43
    %v45 = vadd.f32 %v33, %v44
    %46 = vset.pattern.permute.xlu0 1
    %47 = vperm.xlu0 %46, %v30
    %v48 = vpop.permute.xlu0 %47
    %v50 = vlaneseq
    %v51 = vshrl.u32 %v50, 7
    %v52 = vsub.s32 0, %v51
    %v53 = vrot.slane %v48, %v52
    %v54 = vadd.f32 %v45, %v53
    %v55 = vxor.u32 %v54, 2147483648
    %v56 = vmul.f32 %v55, 1.442695
    %v57 = vpow.pop %v56
    %v58 = vadd.f32 %v57, 1.0
    %v59 = vrcp.pop %v58
    %v60 = vmul.f32 1.0, %v59
    %v61 = vmax.f32 %v60, 0.05
    %v62 = vmin.f32 %v61, 0.95
    %63 = vst [vmem:[#allocation5] sm:$0x1] %v62
    // Predicated region
    $region22: #{tpu_custom_call.1} parent=1 // pred_check
      _
    $region23: #{tpu_custom_call.1} parent=1 // pred_check_branch
      %65 = sbr.rel (0) target = $region25
    $region24: #{tpu_custom_call.1} parent=1 // pred_region
      %s67 = ssub.s32 16, 16
      %68 = vsyncadd [#allocation4], %s67
      %s70 = sshll.u32 [#allocation5], 4
      %s71 = int_to_ptr.vmem [resolvable:$true] %s70
      %73 = dma.vmem_to_hbm [thread:$0]  %s71, 16, %s4, [#allocation4]
    $region25: #{tpu_custom_call.1} parent=1 // pred_fallthru
      _
    // Predicated region
    $region26: #{tpu_custom_call.1} parent=1 // pred_check
      _
    $region27: #{tpu_custom_call.1} parent=1 // pred_check_branch
      %75 = sbr.rel (0) target = $region29
    $region28: #{tpu_custom_call.1} parent=1 // pred_region
      %76 = dma.done [#allocation4], 16
    $region29: #{tpu_custom_call.1} parent=1 // pred_fallthru
      _
    %77 = vsyncpa [#allocation3], 1
    %78 = vsyncpa [#allocation4], 1

</llo_original>
